<compile_context>
chip_gen: v6e
topology: v6e:2x2x1
jax: 0.10.0
libtpu: 0.0.40
codegen_flags: <defaults>
</compile_context>

<pallas_src>
import functools

import jax
import jax.numpy as jnp
from jax.experimental import pallas as pl
from jax.experimental.pallas import tpu as pltpu


# ---------------------------------------------------------------------------
# Fused Pallas kernel: conv1 (MXU) + BatchNorm + LeakyReLU + conv2 (MXU + XLU/VPU)
# ---------------------------------------------------------------------------

def _single_disc_kernel(p1t_ref, w1_ref, aux_ref, o_ref, *, ow1, kh2, kw2, ndf):
    """Channels-in-sublanes / (n,h,w)-in-lanes layout throughout.

    p1t_ref : (K1, M1)       bf16  im2col patches of x; rows ordered (c, ki, kj), cols (n, oh, ow).
    w1_ref  : (ndf, K1)      bf16  conv1 weight, PyTorch (OC, IC*KH*KW) flattening.
    aux_ref : (16+ndf, ndf)  f32   rows 0:16   = w2^T  (tap t = ki*kw2+kj, channel on lanes)
                                   rows 16:48, col 0 = gamma, col 1 = beta (BatchNorm2d affine).
    o_ref   : (1, M1)        f32   conv2 result over the full 8x8 grid; only lanes with oh < 5 and
                                   ow < 5 are valid and kept outside the kernel.
    """
    m1 = p1t_ref.shape[1]
    inv_m1 = 1.0 / m1
    n_taps = kh2 * kw2

    # --- conv1 as one MXU matmul: (32,64)bf16 @ (64,M1)bf16 -> (32,M1) f32 --------------------
    y = jnp.dot(w1_ref[...], p1t_ref[...], preferred_element_type=jnp.float32)

    # --- BatchNorm2d batch stats on the (idle) MXU instead of the XLU --------------------------
    # Row sums via matmul against a ones matrix; one-pass biased variance, clamped at 0.
    ones = jnp.ones((m1, 8), jnp.float32)
    s1 = jnp.dot(y, ones, preferred_element_type=jnp.float32)[:, 0:1]        # (32,1)  sum(y)
    s2 = jnp.dot(y * y, ones, preferred_element_type=jnp.float32)[:, 0:1]    # (32,1)  sum(y^2)
    mean = s1 * inv_m1
    var = jnp.maximum(s2 * inv_m1 - mean * mean, 0.0)                        # >= 0 (cancellation)

    # --- BN folded into a single per-channel FMA + LeakyReLU(0.2) as mul+max (VPU, f32) --------
    gamma = aux_ref[n_taps:n_taps + ndf, 0:1]                                # (32,1)
    beta = aux_ref[n_taps:n_taps + ndf, 1:2]                                 # (32,1)
    scale = gamma * jax.lax.rsqrt(var + 1e-5)
    bias = beta - mean * scale
    y = y * scale + bias
    y = jnp.maximum(y, 0.2 * y)                                              # (32, M1) f32

    # --- conv2 (4x4, stride 1, pad 0, OC=1): contract channels on the MXU first ----------------
    w2t = aux_ref[0:n_taps, :]                                               # (16, 32)
    r = jnp.dot(w2t, y, preferred_element_type=jnp.float32)                  # (16, M1)

    # For output column m = n*64 + oh*8 + ow and tap (ki,kj) the needed column is m + ki*8 + kj,
    # so each tap is one static lane roll on the 2-vreg (16,M1) array (XLU) plus a one-hot
    # sublane mask-accumulate on the VPU (iota compare, no broadcast_in_dim).  Wrapped-in garbage
    # only lands in lanes with oh > 4 or ow > 4, which are cropped outside the kernel (asserted
    # in the wrapper: oh1 == ow1 == 8).
    sub = jax.lax.broadcasted_iota(jnp.int32, (n_taps, m1), 0)               # sublane index
    parts = []
    for ki in range(kh2):
        part = None
        for kj in range(kw2):
            t = ki * kw2 + kj
            s = ki * ow1 + kj
            rolled = r if s == 0 else pltpu.roll(r, shift=m1 - s, axis=1)    # [:, m] = r[:, (m+s)%M1]
            contrib = jnp.where(sub == t, rolled, 0.0)
            part = contrib if part is None else part + contrib
        parts.append(part)
    # Tree-accumulate the per-ki partials (breaks the serial VPU add chain).
    while len(parts) > 1:
        nxt = [parts[i] + parts[i + 1] for i in range(0, len(parts) - 1, 2)]
        if len(parts) % 2:
            nxt.append(parts[-1])
        parts = nxt
    acc = parts[0]                                                           # (16, M1)

    # Single 16-row sublane reduce -> one lane-dense (1, M1) store.
    o_ref[...] = jnp.sum(acc, axis=0, keepdims=True)


# ---------------------------------------------------------------------------
# Glue (plain JAX): transposed im2col, spectral norm, params, forward wrapper
# ---------------------------------------------------------------------------

def _im2col_T(x, kh, kw, stride, pad):
    """x: (N, C, H, W) -> transposed patch matrix (C*kh*kw, N*OH*OW).

    Row order (c, ki, kj) matches PyTorch's Conv2d weight flattening; column order (n, oh, ow).
    Tiny; with allow_input_fusion XLA can fuse it directly into the pallas operand.
    """
    N, C, H, W = x.shape
    if pad > 0:
        x = jnp.pad(x, ((0, 0), (0, 0), (pad, pad), (pad, pad)))
    OH = (H + 2 * pad - kh) // stride + 1
    OW = (W + 2 * pad - kw) // stride + 1
    slabs = []
    for ki in range(kh):
        for kj in range(kw):
            slabs.append(x[:, :, ki:ki + stride * OH:stride, kj:kj + stride * OW:stride])
    p = jnp.stack(slabs, axis=0).reshape(kh, kw, N, C, OH, OW)
    p = p.transpose(3, 0, 1, 2, 4, 5).reshape(C * kh * kw, N * OH * OW)
    return p, OH, OW


def spectral_normalize(w, key, n_power_iterations=1, eps=1e-12):
    """Mimics torch.nn.utils.spectral_norm's weight reparametrization (one power iteration).
    Applied once at init; PyTorch updates u every training-mode forward (behavioral divergence)."""
    oc = w.shape[0]
    w_mat = w.reshape(oc, -1)
    u = jax.random.normal(key, (oc,), jnp.float32)
    u = u / (jnp.linalg.norm(u) + eps)
    v = None
    for _ in range(n_power_iterations):
        v = w_mat.T @ u
        v = v / (jnp.linalg.norm(v) + eps)
        u = w_mat @ v
        u = u / (jnp.linalg.norm(u) + eps)
    sigma = u @ (w_mat @ v)
    return w / sigma


def init_params(key, nc=4, ndf=32):
    k1, k2, ku1, ku2 = jax.random.split(key, 4)
    # Deterministic synthetic init (stands in for kaiming_uniform); shapes match nn.Conv2d weights.
    w1 = jax.random.normal(k1, (ndf, nc, 4, 4), jnp.float32) * 0.05   # DownBlock conv (OC,IC,KH,KW)
    w2 = jax.random.normal(k2, (1, ndf, 4, 4), jnp.float32) * 0.05    # final 4x4 conv
    w1 = spectral_normalize(w1, ku1)
    w2 = spectral_normalize(w2, ku2)
    gamma = jnp.ones((ndf,), jnp.float32)                             # BatchNorm2d affine weight
    beta = jnp.zeros((ndf,), jnp.float32)                             # BatchNorm2d affine bias

    # One-time repack into the layouts the fused kernel consumes (no per-forward transposes):
    w1_mat = w1.reshape(ndf, nc * 16).astype(jnp.bfloat16)            # (32, 64) bf16 (MXU lhs)
    w2t = w2.reshape(ndf, 16).T                                       # (16, 32) f32: [tap, channel]
    aux = jnp.zeros((16 + ndf, ndf), jnp.float32)                     # single packed f32 operand
    aux = aux.at[0:16, :].set(w2t)
    aux = aux.at[16:16 + ndf, 0].set(gamma)
    aux = aux.at[16:16 + ndf, 1].set(beta)

    return {"w1": w1, "w2": w2, "gamma": gamma, "beta": beta,         # reference-layout params
            "w1_mat": w1_mat, "aux": aux}                             # kernel-layout packs


def single_disc_forward(x, c, params):
    """x: (N, 4, 16, 16) NCHW f32; c is unused (matches SingleDisc.forward). Returns (N, 1, 5, 5)."""
    del c  # condition tensor is ignored by SingleDisc.forward

    N = x.shape[0]
    p1t, oh1, ow1 = _im2col_T(x, 4, 4, stride=2, pad=1)        # (64, N*64) f32
    # Static guards for the roll-wrap argument inside the kernel (valid output columns never read
    # across a sample boundary only because oh1 == ow1 == 8 and the output is cropped to 5x5).
    assert oh1 == 8 and ow1 == 8, (oh1, ow1)
    p1t = p1t.astype(jnp.bfloat16)                             # halve DMA bytes; MXU is bf16-native
    k1, m1 = p1t.shape
    assert m1 == N * oh1 * ow1
    ndf = params["w1_mat"].shape[0]

    kernel = functools.partial(_single_disc_kernel, ow1=ow1, kh2=4, kw2=4, ndf=ndf)
    flops = (2 * ndf * k1 * m1          # conv1
             + 2 * 2 * ndf * 8 * m1     # BN stat matmuls
             + 2 * 16 * ndf * m1        # conv2 channel contraction
             + (8 * ndf + 5 * 16) * m1) # elementwise + tap accumulation
    bytes_accessed = (p1t.size * 2 + params["w1_mat"].size * 2
                      + params["aux"].size * 4 + m1 * 4)

    out_row = pl.pallas_call(
        kernel,
        out_shape=jax.ShapeDtypeStruct((1, m1), jnp.float32),
        in_specs=[pl.BlockSpec(memory_space=pltpu.MemorySpace.VMEM)] * 3,
        out_specs=pl.BlockSpec(memory_space=pltpu.MemorySpace.VMEM),
        compiler_params=pltpu.CompilerParams(
            # Let XLA fuse the im2col producer of p1t straight into the pallas operand
            # (removes the 16 KiB HBM round trip and one dispatch at N=2).
            allow_input_fusion=[True, False, False]),
        cost_estimate=pl.CostEstimate(flops=flops, transcendentals=ndf,
                                      bytes_accessed=bytes_accessed),
    )(p1t, params["w1_mat"], params["aux"])

    oh2, ow2 = oh1 - 3, ow1 - 3                                # 4x4 conv, stride 1, pad 0 -> 5x5
    out = out_row.reshape(N, oh1, ow1)[:, :oh2, :ow2]          # keep valid positions
    return out.reshape(N, 1, oh2, ow2)


# ---------------------------------------------------------------------------
# Pure-XLA f32 reference (numerical sanity check of the fused kernel)
# ---------------------------------------------------------------------------

def reference_forward(x, params):
    dn = ("NCHW", "OIHW", "NCHW")
    hp = jax.lax.Precision.HIGHEST
    y = jax.lax.conv_general_dilated(x, params["w1"], (2, 2), ((1, 1), (1, 1)),
                                     dimension_numbers=dn, precision=hp)
    mean = jnp.mean(y, axis=(0, 2, 3), keepdims=True)
    var = jnp.mean((y - mean) ** 2, axis=(0, 2, 3), keepdims=True)
    y = (y - mean) * jax.lax.rsqrt(var + 1e-5)
    y = y * params["gamma"].reshape(1, -1, 1, 1) + params["beta"].reshape(1, -1, 1, 1)
    y = jnp.where(y >= 0.0, y, 0.2 * y)
    return jax.lax.conv_general_dilated(y, params["w2"], (1, 1), ((0, 0), (0, 0)),
                                        dimension_numbers=dn, precision=hp)


if __name__ == "__main__":
    key = jax.random.PRNGKey(0)
    kx, kp = jax.random.split(key)
    x = jax.random.normal(kx, (2, 4, 16, 16), jnp.float32)     # NCHW input
    c = jnp.zeros((2, 1), jnp.float32)                         # condition (unused by forward)
    params = init_params(kp, nc=4, ndf=32)

    fwd = jax.jit(single_disc_forward)
    out = jax.block_until_ready(fwd(x, c, params))
    assert out.shape == (2, 1, 5, 5), out.shape
    assert bool(jnp.all(jnp.isfinite(out)))

    # Sanity check against the pure-XLA f32 reference (loose tolerance: bf16 MXU inputs).
    ref = jax.block_until_ready(reference_forward(x, params))
    max_err = float(jnp.max(jnp.abs(out - ref)))
    assert max_err < 1e-1, max_err

    print("KERNEL_OK")
</pallas_src>

<mosaic_0001>
module attributes {stable_mosaic.version = 11 : i64} {
  func.func @_single_disc_kernel(%arg0: memref<64x128xbf16, #tpu.memory_space<vmem>>, %arg1: memref<32x64xbf16, #tpu.memory_space<vmem>>, %arg2: memref<48x32xf32, #tpu.memory_space<vmem>>, %arg3: memref<1x128xf32, #tpu.memory_space<vmem>>) attributes {dimension_semantics = [], scalar_prefetch = 0 : i64, scratch_operands = 0 : i64, tpu.core_type = #tpu.core_type<tc>} {
    %c0 = arith.constant 0 : index
    %c0_0 = arith.constant 0 : index
    %0 = vector.load %arg1[%c0, %c0_0] : memref<32x64xbf16, #tpu.memory_space<vmem>>, vector<32x64xbf16>
    %c0_1 = arith.constant 0 : index
    %c0_2 = arith.constant 0 : index
    %1 = vector.load %arg0[%c0_1, %c0_2] : memref<64x128xbf16, #tpu.memory_space<vmem>>, vector<64x128xbf16>
    %cst = arith.constant dense<0.000000e+00> : vector<32x128xf32>
    %2 = tpu.matmul %0, %1, %cst {dimension_numbers = #tpu.dot_dimension_numbers<[1], [0], [0], [1], [0, 0, 1, 1], [], []>} : vector<32x64xbf16>, vector<64x128xbf16>, vector<32x128xf32> -> vector<32x128xf32>
    %cst_3 = arith.constant 1.000000e+00 : f32
    %3 = vector.broadcast %cst_3 : f32 to vector<128x8xf32>
    %cst_4 = arith.constant dense<0.000000e+00> : vector<32x8xf32>
    %4 = tpu.matmul %2, %3, %cst_4 {dimension_numbers = #tpu.dot_dimension_numbers<[1], [0], [0], [1], [0, 0, 1, 1], [], []>} : vector<32x128xf32>, vector<128x8xf32>, vector<32x8xf32> -> vector<32x8xf32>
    %5 = vector.extract_strided_slice %4 {offsets = [0, 0], sizes = [32, 1], strides = [1, 1]} : vector<32x8xf32> to vector<32x1xf32>
    %6 = arith.mulf %2, %2 : vector<32x128xf32>
    %cst_5 = arith.constant dense<0.000000e+00> : vector<32x8xf32>
    %7 = tpu.matmul %6, %3, %cst_5 {dimension_numbers = #tpu.dot_dimension_numbers<[1], [0], [0], [1], [0, 0, 1, 1], [], []>} : vector<32x128xf32>, vector<128x8xf32>, vector<32x8xf32> -> vector<32x8xf32>
    %8 = vector.extract_strided_slice %7 {offsets = [0, 0], sizes = [32, 1], strides = [1, 1]} : vector<32x8xf32> to vector<32x1xf32>
    %cst_6 = arith.constant 7.812500e-03 : f32
    %9 = vector.broadcast %cst_6 : f32 to vector<32x1xf32>
    %10 = arith.mulf %5, %9 : vector<32x1xf32>
    %cst_7 = arith.constant 7.812500e-03 : f32
    %11 = vector.broadcast %cst_7 : f32 to vector<32x1xf32>
    %12 = arith.mulf %8, %11 : vector<32x1xf32>
    %13 = arith.mulf %10, %10 : vector<32x1xf32>
    %14 = arith.subf %12, %13 : vector<32x1xf32>
    %cst_8 = arith.constant 0.000000e+00 : f32
    %15 = vector.broadcast %cst_8 : f32 to vector<32x1xf32>
    %16 = arith.maximumf %14, %15 : vector<32x1xf32>
    %c16 = arith.constant 16 : index
    %c0_9 = arith.constant 0 : index
    %17 = vector.load %arg2[%c16, %c0_9] : memref<48x32xf32, #tpu.memory_space<vmem>>, vector<32x1xf32>
    %c16_10 = arith.constant 16 : index
    %c1 = arith.constant 1 : index
    %18 = vector.load %arg2[%c16_10, %c1] : memref<48x32xf32, #tpu.memory_space<vmem>>, vector<32x1xf32>
    %cst_11 = arith.constant 9.99999974E-6 : f32
    %19 = vector.broadcast %cst_11 : f32 to vector<32x1xf32>
    %20 = arith.addf %16, %19 : vector<32x1xf32>
    %21 = math.rsqrt %20 : vector<32x1xf32>
    %22 = arith.mulf %17, %21 : vector<32x1xf32>
    %23 = arith.mulf %10, %22 : vector<32x1xf32>
    %24 = arith.subf %18, %23 : vector<32x1xf32>
    %25 = vector.broadcast %22 : vector<32x1xf32> to vector<32x128xf32>
    %26 = arith.mulf %2, %25 : vector<32x128xf32>
    %27 = vector.broadcast %24 : vector<32x1xf32> to vector<32x128xf32>
    %28 = arith.addf %26, %27 : vector<32x128xf32>
    %cst_12 = arith.constant 2.000000e-01 : f32
    %29 = vector.broadcast %cst_12 : f32 to vector<32x128xf32>
    %30 = arith.mulf %29, %28 : vector<32x128xf32>
    %31 = arith.maximumf %28, %30 : vector<32x128xf32>
    %c0_13 = arith.constant 0 : index
    %c0_14 = arith.constant 0 : index
    %32 = vector.load %arg2[%c0_13, %c0_14] : memref<48x32xf32, #tpu.memory_space<vmem>>, vector<16x32xf32>
    %cst_15 = arith.constant dense<0.000000e+00> : vector<16x128xf32>
    %33 = tpu.matmul %32, %31, %cst_15 {dimension_numbers = #tpu.dot_dimension_numbers<[1], [0], [0], [1], [0, 0, 1, 1], [], []>} : vector<16x32xf32>, vector<32x128xf32>, vector<16x128xf32> -> vector<16x128xf32>
    %34 = tpu.iota {dimensions = array<i32: 0>} : vector<16x128xi32>
    %c0_i32 = arith.constant 0 : i32
    %35 = vector.broadcast %c0_i32 : i32 to vector<16x128xi32>
    %36 = arith.cmpi eq, %34, %35 : vector<16x128xi32>
    %cst_16 = arith.constant 0.000000e+00 : f32
    %37 = vector.broadcast %cst_16 : f32 to vector<16x128xf32>
    %38 = arith.select %36, %33, %37 : vector<16x128xi1>, vector<16x128xf32>
    %c127_i32 = arith.constant 127 : i32
    %39 = tpu.dynamic_rotate %33 by %c127_i32 dim 1 : vector<16x128xf32>, i32 -> vector<16x128xf32>
    %c1_i32 = arith.constant 1 : i32
    %40 = vector.broadcast %c1_i32 : i32 to vector<16x128xi32>
    %41 = arith.cmpi eq, %34, %40 : vector<16x128xi32>
    %cst_17 = arith.constant 0.000000e+00 : f32
    %42 = vector.broadcast %cst_17 : f32 to vector<16x128xf32>
    %43 = arith.select %41, %39, %42 : vector<16x128xi1>, vector<16x128xf32>
    %44 = arith.addf %38, %43 : vector<16x128xf32>
    %c126_i32 = arith.constant 126 : i32
    %45 = tpu.dynamic_rotate %33 by %c126_i32 dim 1 : vector<16x128xf32>, i32 -> vector<16x128xf32>
    %c2_i32 = arith.constant 2 : i32
    %46 = vector.broadcast %c2_i32 : i32 to vector<16x128xi32>
    %47 = arith.cmpi eq, %34, %46 : vector<16x128xi32>
    %cst_18 = arith.constant 0.000000e+00 : f32
    %48 = vector.broadcast %cst_18 : f32 to vector<16x128xf32>
    %49 = arith.select %47, %45, %48 : vector<16x128xi1>, vector<16x128xf32>
    %50 = arith.addf %44, %49 : vector<16x128xf32>
    %c125_i32 = arith.constant 125 : i32
    %51 = tpu.dynamic_rotate %33 by %c125_i32 dim 1 : vector<16x128xf32>, i32 -> vector<16x128xf32>
    %c3_i32 = arith.constant 3 : i32
    %52 = vector.broadcast %c3_i32 : i32 to vector<16x128xi32>
    %53 = arith.cmpi eq, %34, %52 : vector<16x128xi32>
    %cst_19 = arith.constant 0.000000e+00 : f32
    %54 = vector.broadcast %cst_19 : f32 to vector<16x128xf32>
    %55 = arith.select %53, %51, %54 : vector<16x128xi1>, vector<16x128xf32>
    %56 = arith.addf %50, %55 : vector<16x128xf32>
    %c120_i32 = arith.constant 120 : i32
    %57 = tpu.dynamic_rotate %33 by %c120_i32 dim 1 : vector<16x128xf32>, i32 -> vector<16x128xf32>
    %c4_i32 = arith.constant 4 : i32
    %58 = vector.broadcast %c4_i32 : i32 to vector<16x128xi32>
    %59 = arith.cmpi eq, %34, %58 : vector<16x128xi32>
    %cst_20 = arith.constant 0.000000e+00 : f32
    %60 = vector.broadcast %cst_20 : f32 to vector<16x128xf32>
    %61 = arith.select %59, %57, %60 : vector<16x128xi1>, vector<16x128xf32>
    %c119_i32 = arith.constant 119 : i32
    %62 = tpu.dynamic_rotate %33 by %c119_i32 dim 1 : vector<16x128xf32>, i32 -> vector<16x128xf32>
    %c5_i32 = arith.constant 5 : i32
    %63 = vector.broadcast %c5_i32 : i32 to vector<16x128xi32>
    %64 = arith.cmpi eq, %34, %63 : vector<16x128xi32>
    %cst_21 = arith.constant 0.000000e+00 : f32
    %65 = vector.broadcast %cst_21 : f32 to vector<16x128xf32>
    %66 = arith.select %64, %62, %65 : vector<16x128xi1>, vector<16x128xf32>
    %67 = arith.addf %61, %66 : vector<16x128xf32>
    %c118_i32 = arith.constant 118 : i32
    %68 = tpu.dynamic_rotate %33 by %c118_i32 dim 1 : vector<16x128xf32>, i32 -> vector<16x128xf32>
    %c6_i32 = arith.constant 6 : i32
    %69 = vector.broadcast %c6_i32 : i32 to vector<16x128xi32>
    %70 = arith.cmpi eq, %34, %69 : vector<16x128xi32>
    %cst_22 = arith.constant 0.000000e+00 : f32
    %71 = vector.broadcast %cst_22 : f32 to vector<16x128xf32>
    %72 = arith.select %70, %68, %71 : vector<16x128xi1>, vector<16x128xf32>
    %73 = arith.addf %67, %72 : vector<16x128xf32>
    %c117_i32 = arith.constant 117 : i32
    %74 = tpu.dynamic_rotate %33 by %c117_i32 dim 1 : vector<16x128xf32>, i32 -> vector<16x128xf32>
    %c7_i32 = arith.constant 7 : i32
    %75 = vector.broadcast %c7_i32 : i32 to vector<16x128xi32>
    %76 = arith.cmpi eq, %34, %75 : vector<16x128xi32>
    %cst_23 = arith.constant 0.000000e+00 : f32
    %77 = vector.broadcast %cst_23 : f32 to vector<16x128xf32>
    %78 = arith.select %76, %74, %77 : vector<16x128xi1>, vector<16x128xf32>
    %79 = arith.addf %73, %78 : vector<16x128xf32>
    %c112_i32 = arith.constant 112 : i32
    %80 = tpu.dynamic_rotate %33 by %c112_i32 dim 1 : vector<16x128xf32>, i32 -> vector<16x128xf32>
    %c8_i32 = arith.constant 8 : i32
    %81 = vector.broadcast %c8_i32 : i32 to vector<16x128xi32>
    %82 = arith.cmpi eq, %34, %81 : vector<16x128xi32>
    %cst_24 = arith.constant 0.000000e+00 : f32
    %83 = vector.broadcast %cst_24 : f32 to vector<16x128xf32>
    %84 = arith.select %82, %80, %83 : vector<16x128xi1>, vector<16x128xf32>
    %c111_i32 = arith.constant 111 : i32
    %85 = tpu.dynamic_rotate %33 by %c111_i32 dim 1 : vector<16x128xf32>, i32 -> vector<16x128xf32>
    %c9_i32 = arith.constant 9 : i32
    %86 = vector.broadcast %c9_i32 : i32 to vector<16x128xi32>
    %87 = arith.cmpi eq, %34, %86 : vector<16x128xi32>
    %cst_25 = arith.constant 0.000000e+00 : f32
    %88 = vector.broadcast %cst_25 : f32 to vector<16x128xf32>
    %89 = arith.select %87, %85, %88 : vector<16x128xi1>, vector<16x128xf32>
    %90 = arith.addf %84, %89 : vector<16x128xf32>
    %c110_i32 = arith.constant 110 : i32
    %91 = tpu.dynamic_rotate %33 by %c110_i32 dim 1 : vector<16x128xf32>, i32 -> vector<16x128xf32>
    %c10_i32 = arith.constant 10 : i32
    %92 = vector.broadcast %c10_i32 : i32 to vector<16x128xi32>
    %93 = arith.cmpi eq, %34, %92 : vector<16x128xi32>
    %cst_26 = arith.constant 0.000000e+00 : f32
    %94 = vector.broadcast %cst_26 : f32 to vector<16x128xf32>
    %95 = arith.select %93, %91, %94 : vector<16x128xi1>, vector<16x128xf32>
    %96 = arith.addf %90, %95 : vector<16x128xf32>
    %c109_i32 = arith.constant 109 : i32
    %97 = tpu.dynamic_rotate %33 by %c109_i32 dim 1 : vector<16x128xf32>, i32 -> vector<16x128xf32>
    %c11_i32 = arith.constant 11 : i32
    %98 = vector.broadcast %c11_i32 : i32 to vector<16x128xi32>
    %99 = arith.cmpi eq, %34, %98 : vector<16x128xi32>
    %cst_27 = arith.constant 0.000000e+00 : f32
    %100 = vector.broadcast %cst_27 : f32 to vector<16x128xf32>
    %101 = arith.select %99, %97, %100 : vector<16x128xi1>, vector<16x128xf32>
    %102 = arith.addf %96, %101 : vector<16x128xf32>
    %c104_i32 = arith.constant 104 : i32
    %103 = tpu.dynamic_rotate %33 by %c104_i32 dim 1 : vector<16x128xf32>, i32 -> vector<16x128xf32>
    %c12_i32 = arith.constant 12 : i32
    %104 = vector.broadcast %c12_i32 : i32 to vector<16x128xi32>
    %105 = arith.cmpi eq, %34, %104 : vector<16x128xi32>
    %cst_28 = arith.constant 0.000000e+00 : f32
    %106 = vector.broadcast %cst_28 : f32 to vector<16x128xf32>
    %107 = arith.select %105, %103, %106 : vector<16x128xi1>, vector<16x128xf32>
    %c103_i32 = arith.constant 103 : i32
    %108 = tpu.dynamic_rotate %33 by %c103_i32 dim 1 : vector<16x128xf32>, i32 -> vector<16x128xf32>
    %c13_i32 = arith.constant 13 : i32
    %109 = vector.broadcast %c13_i32 : i32 to vector<16x128xi32>
    %110 = arith.cmpi eq, %34, %109 : vector<16x128xi32>
    %cst_29 = arith.constant 0.000000e+00 : f32
    %111 = vector.broadcast %cst_29 : f32 to vector<16x128xf32>
    %112 = arith.select %110, %108, %111 : vector<16x128xi1>, vector<16x128xf32>
    %113 = arith.addf %107, %112 : vector<16x128xf32>
    %c102_i32 = arith.constant 102 : i32
    %114 = tpu.dynamic_rotate %33 by %c102_i32 dim 1 : vector<16x128xf32>, i32 -> vector<16x128xf32>
    %c14_i32 = arith.constant 14 : i32
    %115 = vector.broadcast %c14_i32 : i32 to vector<16x128xi32>
    %116 = arith.cmpi eq, %34, %115 : vector<16x128xi32>
    %cst_30 = arith.constant 0.000000e+00 : f32
    %117 = vector.broadcast %cst_30 : f32 to vector<16x128xf32>
    %118 = arith.select %116, %114, %117 : vector<16x128xi1>, vector<16x128xf32>
    %119 = arith.addf %113, %118 : vector<16x128xf32>
    %c101_i32 = arith.constant 101 : i32
    %120 = tpu.dynamic_rotate %33 by %c101_i32 dim 1 : vector<16x128xf32>, i32 -> vector<16x128xf32>
    %c15_i32 = arith.constant 15 : i32
    %121 = vector.broadcast %c15_i32 : i32 to vector<16x128xi32>
    %122 = arith.cmpi eq, %34, %121 : vector<16x128xi32>
    %cst_31 = arith.constant 0.000000e+00 : f32
    %123 = vector.broadcast %cst_31 : f32 to vector<16x128xf32>
    %124 = arith.select %122, %120, %123 : vector<16x128xi1>, vector<16x128xf32>
    %125 = arith.addf %119, %124 : vector<16x128xf32>
    %126 = arith.addf %56, %79 : vector<16x128xf32>
    %127 = arith.addf %102, %125 : vector<16x128xf32>
    %128 = arith.addf %126, %127 : vector<16x128xf32>
    %cst_32 = arith.constant dense<0.000000e+00> : vector<128xf32>
    %129 = vector.multi_reduction <add>, %128, %cst_32 [0] : vector<16x128xf32> to vector<128xf32>
    %130 = vector.shape_cast %129 : vector<128xf32> to vector<1x128xf32>
    %c0_33 = arith.constant 0 : index
    %c0_34 = arith.constant 0 : index
    %131 = vector.load %arg3[%c0_33, %c0_34] : memref<1x128xf32, #tpu.memory_space<vmem>>, vector<1x128xf32>
    tpu.vector_store %arg3[%c0_33, %c0_34], %130 {strides = array<i32>} : memref<1x128xf32, #tpu.memory_space<vmem>>, vector<1x128xf32>,
    return
  }
}

</mosaic_0001>

<llo_original>
// kernel: single_disc_forward.1
$region0: #{single_disc_forward.1}
  #allocation0 [shape = 'u32[]', space=smem, size = 0x4, offset = 0x4, fixed_abs, tag = 'smem constant byte address 0x4 - core index']
  #allocation1 [shape = 'u32[144,128]{1,0:T(1,128)}', space=vmem, size = 0x12000, scoped, tag = 'internal scratch']
  %s0 = inlined_call_operand.vmem [shape: bf16[64,128], index: 0, kind: input, shape index: {}]
  %s1 = inlined_call_operand.vmem [shape: bf16[32,64], index: 1, kind: input, shape index: {}]
  %s2 = inlined_call_operand.vmem [shape: f32[48,32], index: 2, kind: input, shape index: {}]
  %s3 = inlined_call_operand.vmem [shape: f32[1,128], index: 3, kind: output, shape index: {}]
  %s4 = sld [smem:[#allocation0]]
  $region22: #{single_disc_forward.1} parent=0
    _
  %s6 = ssub.s32 1, %s4
  %s7 = scalar_select 0, %s6, %s4
  // Predicated region
  $region2: #{single_disc_forward.1} parent=0 // pred_check
    _
  $region3: #{single_disc_forward.1} parent=0 // pred_check_branch
    %9 = sbr.rel (0) target = $region5
  $region4: #{single_disc_forward.1} parent=0 // pred_region
    _
  $region5: #{single_disc_forward.1} parent=0 // pred_fallthru
    _
  // Predicated region
  $region6: #{single_disc_forward.1} parent=0 // pred_check
    _
  $region7: #{single_disc_forward.1} parent=0 // pred_check_branch
    %11 = sbr.rel (0) target = $region9
  $region8: #{single_disc_forward.1} parent=0 // pred_region
    _
  $region9: #{single_disc_forward.1} parent=0 // pred_fallthru
    _
  // Predicated region
  $region10: #{single_disc_forward.1} parent=0 // pred_check
    _
  $region11: #{single_disc_forward.1} parent=0 // pred_check_branch
    %13 = sbr.rel (0) target = $region13
  $region12: #{single_disc_forward.1} parent=0 // pred_region
    _
  $region13: #{single_disc_forward.1} parent=0 // pred_fallthru
    _
  %v15 = vld [vmem:[%s1] sm:$0xf]
  %v16 = vld [vmem:[%s1 + $0x4] sm:$0xf]
  %v17 = vld [vmem:[%s1 + $0x8] sm:$0xf]
  %v18 = vld [vmem:[%s1 + $0xc] sm:$0xf]
  %v19 = vld [vmem:[%s0] sm:$0xf]
  %v20 = vld [vmem:[%s0 + $0x4] sm:$0xf]
  %v21 = vld [vmem:[%s0 + $0x8] sm:$0xf]
  %v22 = vld [vmem:[%s0 + $0xc] sm:$0xf]
  %v23 = vld [vmem:[%s0 + $0x10] sm:$0xf]
  %v24 = vld [vmem:[%s0 + $0x14] sm:$0xf]
  %v25 = vld [vmem:[%s0 + $0x18] sm:$0xf]
  %v26 = vld [vmem:[%s0 + $0x1c] sm:$0xf]
  %v31 = vunpack.c.l.b16 %v15
  %v32 = vunpack.c.l.b16 %v16
  %v33 = vunpack.c.l.b16 %v17
  %v34 = vunpack.c.l.b16 %v18
  %v35 = vpack.c.b16 %v32, %v31
  %v36 = vpack.c.b16 %v34, %v33
  %v45 = vunpack.c.l.b16 %v19
  %v46 = vunpack.c.l.b16 %v20
  %v47 = vunpack.c.l.b16 %v21
  %v48 = vunpack.c.l.b16 %v22
  %v49 = vunpack.c.l.b16 %v23
  %v50 = vunpack.c.l.b16 %v24
  %v51 = vunpack.c.l.b16 %v25
  %v52 = vunpack.c.l.b16 %v26
  %v53 = vpack.c.b16 %v46, %v45
  %v54 = vpack.c.b16 %v48, %v47
  %v55 = vpack.c.b16 %v50, %v49
  %v56 = vpack.c.b16 %v52, %v51
  %vm61 = vcmask 523264
  %v63 = vsel %vm61, %v35, 0
  %v66 = vsel %vm61, %v36, 0
  %68 = vmatprep.subr.bf16.mxu0 0
  %69 = vmatpush1.bf16.msra.mxu0 0
  %70 = vmatprep.subr.bf16.mxu0 0
  %71 = vmatpush1.bf16.msra.mxu0 0
  %72 = vmatprep.subr.bf16.mxu0 0
  %73 = vmatpush1.bf16.msra.mxu0 0
  %74 = vmatprep.subr.bf16.mxu0 0
  %75 = vmatpush1.bf16.msra.mxu0 0
  %76 = vmatprep.subr.bf16.mxu0 0
  %77 = vmatpush1.bf16.msra.mxu0 %v56
  %78 = vmatprep.subr.bf16.mxu0 0
  %79 = vmatpush1.bf16.msra.mxu0 %v55
  %80 = vmatprep.subr.bf16.mxu0 0
  %81 = vmatpush1.bf16.msra.mxu0 %v54
  %82 = vmatprep.subr.bf16.mxu0 0
  %83 = vmatpush1.bf16.msra.mxu0 %v53
  %84 = vmatprep.subr.bf16.mxu0 0
  %85 = vmatpush2.bf16.msra.mxu0 0
  %86 = vmatprep.subr.bf16.mxu0 0
  %87 = vmatpush2.bf16.msra.mxu0 0
  %88 = vmatprep.subr.bf16.mxu0 0
  %89 = vmatpush2.bf16.msra.mxu0 0
  %90 = vmatprep.subr.bf16.mxu0 0
  %91 = vmatpush2.bf16.msra.mxu0 0
  %92 = vmatprep.subr.bf16.mxu0 0
  %93 = vmatpush2.bf16.msra.mxu0 0
  %94 = vmatprep.subr.bf16.mxu0 0
  %95 = vmatpush2.bf16.msra.mxu0 0
  %96 = vmatprep.subr.bf16.mxu0 0
  %97 = vmatpush2.bf16.msra.mxu0 0
  %98 = vmatprep.subr.bf16.mxu0 0
  %99 = vmatpush2.bf16.msra.mxu0 0
  %100 = vmatprep.mubr.bf16.mxu0 0
  %101 = vmatmul.mubr.bf16.gmra.mxu0 %v63
  %v102 = vpop.f32.mrf.mxu0
  %v103 = vadd.f32 0.0, %v102
  %v104 = vpop.f32.mrf.mxu0
  %v105 = vpop.f32.mrf.mxu0
  %v106 = vadd.f32 0.0, %v105
  %v107 = vpop.f32.mrf.mxu0
  %108 = vmatprep.mubr.bf16.mxu0 0
  %109 = vmatmul.mubr.bf16.gmra.mxu0 %v66
  %v110 = vpop.f32.mrf.mxu0
  %v111 = vadd.f32 0.0, %v110
  %v112 = vpop.f32.mrf.mxu0
  %v113 = vpop.f32.mrf.mxu0
  %v114 = vadd.f32 0.0, %v113
  %v115 = vpop.f32.mrf.mxu0
  %116 = vdwg.mxu0
  %117 = vmatprep.subr.mxu0 0.0
  %118 = vmatpush1.msra.mxu0 1.0
  %119 = vmatprep.subr.mxu0 0.0
  %120 = vmatpush1.msra.mxu0 1.0
  %121 = vmatprep.subr.mxu0 0.0
  %122 = vmatpush1.msra.mxu0 1.0
  %123 = vmatprep.subr.mxu0 0.0
  %124 = vmatpush1.msra.mxu0 1.0
  %125 = vmatprep.subr.mxu0 0.0
  %126 = vmatpush1.msra.mxu0 1.0
  %127 = vmatprep.subr.mxu0 0.0
  %128 = vmatpush1.msra.mxu0 1.0
  %129 = vmatprep.subr.mxu0 0.0
  %130 = vmatpush1.msra.mxu0 1.0
  %131 = vmatprep.subr.mxu0 0.0
  %132 = vmatpush1.msra.mxu0 1.0
  %133 = vmatprep.subr.mxu0 0.0
  %134 = vmatpush1.msra.mxu0 1.0
  %135 = vmatprep.subr.mxu0 0.0
  %136 = vmatpush1.msra.mxu0 1.0
  %137 = vmatprep.subr.mxu0 0.0
  %138 = vmatpush1.msra.mxu0 1.0
  %139 = vmatprep.subr.mxu0 0.0
  %140 = vmatpush1.msra.mxu0 1.0
  %141 = vmatprep.subr.mxu0 0.0
  %142 = vmatpush1.msra.mxu0 1.0
  %143 = vmatprep.subr.mxu0 0.0
  %144 = vmatpush1.msra.mxu0 1.0
  %145 = vmatprep.subr.mxu0 0.0
  %146 = vmatpush1.msra.mxu0 1.0
  %147 = vmatprep.subr.mxu0 0.0
  %148 = vmatpush1.msra.mxu0 1.0
  %149 = vmatprep.subr.mxu0 0.0
  %150 = vmatpush2.msra.mxu0 0.0
  %151 = vmatprep.subr.mxu0 0.0
  %152 = vmatpush2.msra.mxu0 0.0
  %153 = vmatprep.subr.mxu0 0.0
  %154 = vmatpush2.msra.mxu0 0.0
  %155 = vmatprep.subr.mxu0 0.0
  %156 = vmatpush2.msra.mxu0 0.0
  %157 = vmatprep.subr.mxu0 0.0
  %158 = vmatpush2.msra.mxu0 0.0
  %159 = vmatprep.subr.mxu0 0.0
  %160 = vmatpush2.msra.mxu0 0.0
  %161 = vmatprep.subr.mxu0 0.0
  %162 = vmatpush2.msra.mxu0 0.0
  %163 = vmatprep.subr.mxu0 0.0
  %164 = vmatpush2.msra.mxu0 0.0
  %165 = vmatprep.subr.mxu0 0.0
  %166 = vmatpush2.msra.mxu0 0.0
  %167 = vmatprep.subr.mxu0 0.0
  %168 = vmatpush2.msra.mxu0 0.0
  %169 = vmatprep.subr.mxu0 0.0
  %170 = vmatpush2.msra.mxu0 0.0
  %171 = vmatprep.subr.mxu0 0.0
  %172 = vmatpush2.msra.mxu0 0.0
  %173 = vmatprep.subr.mxu0 0.0
  %174 = vmatpush2.msra.mxu0 0.0
  %175 = vmatprep.subr.mxu0 0.0
  %176 = vmatpush2.msra.mxu0 0.0
  %177 = vmatprep.subr.mxu0 0.0
  %178 = vmatpush2.msra.mxu0 0.0
  %179 = vmatprep.subr.mxu0 0.0
  %180 = vmatpush2.msra.mxu0 0.0
  %181 = vmatprep.mubr.f32.mxu0 0.0
  %182 = vmatmul.mubr.f32.gmra.mxu0 %v103
  %v183 = vpop.f32.mrf.mxu0
  %v184 = vadd.f32 0.0, %v183
  %v185 = vpop.f32.mrf.mxu0
  %186 = vmatprep.mubr.f32.mxu0 0.0
  %187 = vmatmul.mubr.f32.gmra.mxu0 %v106
  %v188 = vpop.f32.mrf.mxu0
  %v189 = vadd.f32 0.0, %v188
  %v190 = vpop.f32.mrf.mxu0
  %191 = vmatprep.mubr.f32.mxu0 0.0
  %192 = vmatmul.mubr.f32.gmra.mxu0 %v111
  %v193 = vpop.f32.mrf.mxu0
  %v194 = vadd.f32 0.0, %v193
  %v195 = vpop.f32.mrf.mxu0
  %196 = vmatprep.mubr.f32.mxu0 0.0
  %197 = vmatmul.mubr.f32.gmra.mxu0 %v114
  %v198 = vpop.f32.mrf.mxu0
  %v199 = vadd.f32 0.0, %v198
  %v200 = vpop.f32.mrf.mxu0
  %201 = vdwg.mxu0
  %v202 = vmul.f32 %v103, %v103
  %v203 = vmul.f32 %v106, %v106
  %v204 = vmul.f32 %v111, %v111
  %v205 = vmul.f32 %v114, %v114
  %206 = vmatprep.subr.mxu0 0.0
  %207 = vmatpush1.msra.mxu0 1.0
  %208 = vmatprep.subr.mxu0 0.0
  %209 = vmatpush1.msra.mxu0 1.0
  %210 = vmatprep.subr.mxu0 0.0
  %211 = vmatpush1.msra.mxu0 1.0
  %212 = vmatprep.subr.mxu0 0.0
  %213 = vmatpush1.msra.mxu0 1.0
  %214 = vmatprep.subr.mxu0 0.0
  %215 = vmatpush1.msra.mxu0 1.0
  %216 = vmatprep.subr.mxu0 0.0
  %217 = vmatpush1.msra.mxu0 1.0
  %218 = vmatprep.subr.mxu0 0.0
  %219 = vmatpush1.msra.mxu0 1.0
  %220 = vmatprep.subr.mxu0 0.0
  %221 = vmatpush1.msra.mxu0 1.0
  %222 = vmatprep.subr.mxu0 0.0
  %223 = vmatpush1.msra.mxu0 1.0
  %224 = vmatprep.subr.mxu0 0.0
  %225 = vmatpush1.msra.mxu0 1.0
  %226 = vmatprep.subr.mxu0 0.0
  %227 = vmatpush1.msra.mxu0 1.0
  %228 = vmatprep.subr.mxu0 0.0
  %229 = vmatpush1.msra.mxu0 1.0
  %230 = vmatprep.subr.mxu0 0.0
  %231 = vmatpush1.msra.mxu0 1.0
  %232 = vmatprep.subr.mxu0 0.0
  %233 = vmatpush1.msra.mxu0 1.0
  %234 = vmatprep.subr.mxu0 0.0
  %235 = vmatpush1.msra.mxu0 1.0
  %236 = vmatprep.subr.mxu0 0.0
  %237 = vmatpush1.msra.mxu0 1.0
  %238 = vmatprep.subr.mxu0 0.0
  %239 = vmatpush2.msra.mxu0 0.0
  %240 = vmatprep.subr.mxu0 0.0
  %241 = vmatpush2.msra.mxu0 0.0
  %242 = vmatprep.subr.mxu0 0.0
  %243 = vmatpush2.msra.mxu0 0.0
  %244 = vmatprep.subr.mxu0 0.0
  %245 = vmatpush2.msra.mxu0 0.0
  %246 = vmatprep.subr.mxu0 0.0
  %247 = vmatpush2.msra.mxu0 0.0
  %248 = vmatprep.subr.mxu0 0.0
  %249 = vmatpush2.msra.mxu0 0.0
  %250 = vmatprep.subr.mxu0 0.0
  %251 = vmatpush2.msra.mxu0 0.0
  %252 = vmatprep.subr.mxu0 0.0
  %253 = vmatpush2.msra.mxu0 0.0
  %254 = vmatprep.subr.mxu0 0.0
  %255 = vmatpush2.msra.mxu0 0.0
  %256 = vmatprep.subr.mxu0 0.0
  %257 = vmatpush2.msra.mxu0 0.0
  %258 = vmatprep.subr.mxu0 0.0
  %259 = vmatpush2.msra.mxu0 0.0
  %260 = vmatprep.subr.mxu0 0.0
  %261 = vmatpush2.msra.mxu0 0.0
  %262 = vmatprep.subr.mxu0 0.0
  %263 = vmatpush2.msra.mxu0 0.0
  %264 = vmatprep.subr.mxu0 0.0
  %265 = vmatpush2.msra.mxu0 0.0
  %266 = vmatprep.subr.mxu0 0.0
  %267 = vmatpush2.msra.mxu0 0.0
  %268 = vmatprep.subr.mxu0 0.0
  %269 = vmatpush2.msra.mxu0 0.0
  %270 = vmatprep.mubr.f32.mxu0 0.0
  %271 = vmatmul.mubr.f32.gmra.mxu0 %v202
  %v272 = vpop.f32.mrf.mxu0
  %v273 = vadd.f32 0.0, %v272
  %v274 = vpop.f32.mrf.mxu0
  %275 = vmatprep.mubr.f32.mxu0 0.0
  %276 = vmatmul.mubr.f32.gmra.mxu0 %v203
  %v277 = vpop.f32.mrf.mxu0
  %v278 = vadd.f32 0.0, %v277
  %v279 = vpop.f32.mrf.mxu0
  %280 = vmatprep.mubr.f32.mxu0 0.0
  %281 = vmatmul.mubr.f32.gmra.mxu0 %v204
  %v282 = vpop.f32.mrf.mxu0
  %v283 = vadd.f32 0.0, %v282
  %v284 = vpop.f32.mrf.mxu0
  %285 = vmatprep.mubr.f32.mxu0 0.0
  %286 = vmatmul.mubr.f32.gmra.mxu0 %v205
  %v287 = vpop.f32.mrf.mxu0
  %v288 = vadd.f32 0.0, %v287
  %v289 = vpop.f32.mrf.mxu0
  %290 = vdwg.mxu0
  %v291 = vmul.f32 %v184, 0.0078125
  %v292 = vmul.f32 %v189, 0.0078125
  %v293 = vmul.f32 %v194, 0.0078125
  %v294 = vmul.f32 %v199, 0.0078125
  %v295 = vmul.f32 %v273, 0.0078125
  %v296 = vmul.f32 %v278, 0.0078125
  %v297 = vmul.f32 %v283, 0.0078125
  %v298 = vmul.f32 %v288, 0.0078125
  %v299 = vmul.f32 %v291, %v291
  %v300 = vmul.f32 %v292, %v292
  %v301 = vmul.f32 %v293, %v293
  %v302 = vmul.f32 %v294, %v294
  %v303 = vsub.f32 %v295, %v299
  %v304 = vsub.f32 %v296, %v300
  %v305 = vsub.f32 %v297, %v301
  %v306 = vsub.f32 %v298, %v302
  %v307 = vmax.f32 %v303, 0.0
  %v308 = vmax.f32 %v304, 0.0
  %v309 = vmax.f32 %v305, 0.0
  %v310 = vmax.f32 %v306, 0.0
  %v311 = vld [vmem:[%s2 + $0x10] sm:$0xff]
  %v312 = vld [vmem:[%s2 + $0x18] sm:$0xff]
  %v313 = vld [vmem:[%s2 + $0x20] sm:$0xff]
  %v314 = vld [vmem:[%s2 + $0x28] sm:$0xff]
  %v315 = vadd.f32 %v307, 1e-05
  %v316 = vadd.f32 %v308, 1e-05
  %v317 = vadd.f32 %v309, 1e-05
  %v318 = vadd.f32 %v310, 1e-05
  %v319 = vrsqrt.pop %v315
  %v320 = vrsqrt.pop %v316
  %v321 = vrsqrt.pop %v317
  %v322 = vrsqrt.pop %v318
  %v323 = vmul.f32 %v311, %v319
  %v324 = vmul.f32 %v312, %v320
  %v325 = vmul.f32 %v313, %v321
  %v326 = vmul.f32 %v314, %v322
  %v327 = vmul.f32 %v291, %v323
  %v328 = vmul.f32 %v292, %v324
  %v329 = vmul.f32 %v293, %v325
  %v330 = vmul.f32 %v294, %v326
  %335 = vrot.lane.b32.xlu0 %v327, 1
  %v336 = vpop.permute.xlu0 %335
  %337 = vrot.lane.b32.xlu0 %v328, 1
  %v338 = vpop.permute.xlu0 %337
  %339 = vrot.lane.b32.xlu0 %v329, 1
  %v340 = vpop.permute.xlu0 %339
  %341 = vrot.lane.b32.xlu0 %v330, 1
  %v342 = vpop.permute.xlu0 %341
  %v347 = vsub.f32 %v311, %v336
  %v348 = vsub.f32 %v312, %v338
  %v349 = vsub.f32 %v313, %v340
  %v350 = vsub.f32 %v314, %v342
  %352 = vset.pattern.permute.xlu0 0
  %353 = vperm.xlu0 %352, %v323
  %v354 = vpop.permute.xlu0 %353
  %357 = vset.pattern.permute.xlu0 0
  %358 = vperm.xlu0 %357, %v324
  %v359 = vpop.permute.xlu0 %358
  %362 = vset.pattern.permute.xlu0 0
  %363 = vperm.xlu0 %362, %v325
  %v364 = vpop.permute.xlu0 %363
  %367 = vset.pattern.permute.xlu0 0
  %368 = vperm.xlu0 %367, %v326
  %v369 = vpop.permute.xlu0 %368
  %v371 = vmul.f32 %v103, %v354
  %v372 = vmul.f32 %v106, %v359
  %v373 = vmul.f32 %v111, %v364
  %v374 = vmul.f32 %v114, %v369
  %376 = vset.pattern.permute.xlu0 1
  %377 = vperm.xlu0 %376, %v347
  %v378 = vpop.permute.xlu0 %377
  %381 = vset.pattern.permute.xlu0 1
  %382 = vperm.xlu0 %381, %v348
  %v383 = vpop.permute.xlu0 %382
  %386 = vset.pattern.permute.xlu0 1
  %387 = vperm.xlu0 %386, %v349
  %v388 = vpop.permute.xlu0 %387
  %391 = vset.pattern.permute.xlu0 1
  %392 = vperm.xlu0 %391, %v350
  %v393 = vpop.permute.xlu0 %392
  %v395 = vadd.f32 %v371, %v378
  %v396 = vadd.f32 %v372, %v383
  %v397 = vadd.f32 %v373, %v388
  %v398 = vadd.f32 %v374, %v393
  %v399 = vmul.f32 %v395, 0.2
  %v400 = vmul.f32 %v396, 0.2
  %v401 = vmul.f32 %v397, 0.2
  %v402 = vmul.f32 %v398, 0.2
  %v403 = vmax.f32 %v395, %v399
  %v404 = vmax.f32 %v396, %v400
  %v405 = vmax.f32 %v397, %v401
  %v406 = vmax.f32 %v398, %v402
  %v407 = vld [vmem:[%s2] sm:$0xff]
  %v408 = vld [vmem:[%s2 + $0x8] sm:$0xff]
  %vm409 = vcmask 261120
  %v411 = vsel %vm409, %v407, 0
  %v414 = vsel %vm409, %v408, 0
  %416 = vmatprep.subr.mxu0 0.0
  %417 = vmatpush1.msra.mxu0 0.0
  %418 = vmatprep.subr.mxu0 0.0
  %419 = vmatpush1.msra.mxu0 0.0
  %420 = vmatprep.subr.mxu0 0.0
  %421 = vmatpush1.msra.mxu0 0.0
  %422 = vmatprep.subr.mxu0 0.0
  %423 = vmatpush1.msra.mxu0 0.0
  %424 = vmatprep.subr.mxu0 0.0
  %425 = vmatpush1.msra.mxu0 0.0
  %426 = vmatprep.subr.mxu0 0.0
  %427 = vmatpush1.msra.mxu0 0.0
  %428 = vmatprep.subr.mxu0 0.0
  %429 = vmatpush1.msra.mxu0 0.0
  %430 = vmatprep.subr.mxu0 0.0
  %431 = vmatpush1.msra.mxu0 0.0
  %432 = vmatprep.subr.mxu0 0.0
  %433 = vmatpush1.msra.mxu0 0.0
  %434 = vmatprep.subr.mxu0 0.0
  %435 = vmatpush1.msra.mxu0 0.0
  %436 = vmatprep.subr.mxu0 0.0
  %437 = vmatpush1.msra.mxu0 0.0
  %438 = vmatprep.subr.mxu0 0.0
  %439 = vmatpush1.msra.mxu0 0.0
  %440 = vmatprep.subr.mxu0 0.0
  %441 = vmatpush1.msra.mxu0 %v406
  %442 = vmatprep.subr.mxu0 0.0
  %443 = vmatpush1.msra.mxu0 %v405
  %444 = vmatprep.subr.mxu0 0.0
  %445 = vmatpush1.msra.mxu0 %v404
  %446 = vmatprep.subr.mxu0 0.0
  %447 = vmatpush1.msra.mxu0 %v403
  %448 = vmatprep.subr.mxu0 0.0
  %449 = vmatpush2.msra.mxu0 0.0
  %450 = vmatprep.subr.mxu0 0.0
  %451 = vmatpush2.msra.mxu0 0.0
  %452 = vmatprep.subr.mxu0 0.0
  %453 = vmatpush2.msra.mxu0 0.0
  %454 = vmatprep.subr.mxu0 0.0
  %455 = vmatpush2.msra.mxu0 0.0
  %456 = vmatprep.subr.mxu0 0.0
  %457 = vmatpush2.msra.mxu0 0.0
  %458 = vmatprep.subr.mxu0 0.0
  %459 = vmatpush2.msra.mxu0 0.0
  %460 = vmatprep.subr.mxu0 0.0
  %461 = vmatpush2.msra.mxu0 0.0
  %462 = vmatprep.subr.mxu0 0.0
  %463 = vmatpush2.msra.mxu0 0.0
  %464 = vmatprep.subr.mxu0 0.0
  %465 = vmatpush2.msra.mxu0 0.0
  %466 = vmatprep.subr.mxu0 0.0
  %467 = vmatpush2.msra.mxu0 0.0
  %468 = vmatprep.subr.mxu0 0.0
  %469 = vmatpush2.msra.mxu0 0.0
  %470 = vmatprep.subr.mxu0 0.0
  %471 = vmatpush2.msra.mxu0 0.0
  %472 = vmatprep.subr.mxu0 0.0
  %473 = vmatpush2.msra.mxu0 0.0
  %474 = vmatprep.subr.mxu0 0.0
  %475 = vmatpush2.msra.mxu0 0.0
  %476 = vmatprep.subr.mxu0 0.0
  %477 = vmatpush2.msra.mxu0 0.0
  %478 = vmatprep.subr.mxu0 0.0
  %479 = vmatpush2.msra.mxu0 0.0
  %480 = vmatprep.mubr.f32.mxu0 0.0
  %481 = vmatmul.mubr.f32.gmra.mxu0 %v411
  %v482 = vpop.f32.mrf.mxu0
  %v483 = vadd.f32 0.0, %v482
  %v484 = vpop.f32.mrf.mxu0
  %485 = vmatprep.mubr.f32.mxu0 0.0
  %486 = vmatmul.mubr.f32.gmra.mxu0 %v414
  %v487 = vpop.f32.mrf.mxu0
  %v488 = vadd.f32 0.0, %v487
  %v489 = vpop.f32.mrf.mxu0
  %490 = vdwg.mxu0
  %v491 = vlaneseq
  %v492 = vshrl.u32 %v491, 7
  %v493 = vadd.s32 %v492, 8
  %vm494 = vcmp.eq.s32.totalorder %v492, 0
  %vm495 = vcmp.eq.s32.totalorder %v493, 0
  %v496 = vsel %vm494, %v483, 0.0
  %v497 = vsel %vm495, %v488, 0.0
  %498 = vrot.lane.b32.xlu0 %v483, 127
  %v499 = vpop.permute.xlu0 %498
  %500 = vrot.lane.b32.xlu0 %v488, 127
  %v501 = vpop.permute.xlu0 %500
  %vm502 = vcmp.eq.s32.totalorder %v492, 1
  %vm503 = vcmp.eq.s32.totalorder %v493, 1
  %v504 = vsel %vm502, %v499, 0.0
  %v505 = vsel %vm503, %v501, 0.0
  %v506 = vadd.f32 %v496, %v504
  %v507 = vadd.f32 %v497, %v505
  %508 = vrot.lane.b32.xlu0 %v483, 126
  %v509 = vpop.permute.xlu0 %508
  %510 = vrot.lane.b32.xlu0 %v488, 126
  %v511 = vpop.permute.xlu0 %510
  %vm512 = vcmp.eq.s32.totalorder %v492, 2
  %vm513 = vcmp.eq.s32.totalorder %v493, 2
  %v514 = vsel %vm512, %v509, 0.0
  %v515 = vsel %vm513, %v511, 0.0
  %v516 = vadd.f32 %v506, %v514
  %v517 = vadd.f32 %v507, %v515
  %518 = vrot.lane.b32.xlu0 %v483, 125
  %v519 = vpop.permute.xlu0 %518
  %520 = vrot.lane.b32.xlu0 %v488, 125
  %v521 = vpop.permute.xlu0 %520
  %vm522 = vcmp.eq.s32.totalorder %v492, 3
  %vm523 = vcmp.eq.s32.totalorder %v493, 3
  %v524 = vsel %vm522, %v519, 0.0
  %v525 = vsel %vm523, %v521, 0.0
  %v526 = vadd.f32 %v516, %v524
  %v527 = vadd.f32 %v517, %v525
  %528 = vrot.lane.b32.xlu0 %v483, 120
  %v529 = vpop.permute.xlu0 %528
  %530 = vrot.lane.b32.xlu0 %v488, 120
  %v531 = vpop.permute.xlu0 %530
  %vm532 = vcmp.eq.s32.totalorder %v492, 4
  %vm533 = vcmp.eq.s32.totalorder %v493, 4
  %v534 = vsel %vm532, %v529, 0.0
  %v535 = vsel %vm533, %v531, 0.0
  %536 = vrot.lane.b32.xlu0 %v483, 119
  %v537 = vpop.permute.xlu0 %536
  %538 = vrot.lane.b32.xlu0 %v488, 119
  %v539 = vpop.permute.xlu0 %538
  %vm540 = vcmp.eq.s32.totalorder %v492, 5
  %vm541 = vcmp.eq.s32.totalorder %v493, 5
  %v542 = vsel %vm540, %v537, 0.0
  %v543 = vsel %vm541, %v539, 0.0
  %v544 = vadd.f32 %v534, %v542
  %v545 = vadd.f32 %v535, %v543
  %546 = vrot.lane.b32.xlu0 %v483, 118
  %v547 = vpop.permute.xlu0 %546
  %548 = vrot.lane.b32.xlu0 %v488, 118
  %v549 = vpop.permute.xlu0 %548
  %vm550 = vcmp.eq.s32.totalorder %v492, 6
  %vm551 = vcmp.eq.s32.totalorder %v493, 6
  %v552 = vsel %vm550, %v547, 0.0
  %v553 = vsel %vm551, %v549, 0.0
  %v554 = vadd.f32 %v544, %v552
  %v555 = vadd.f32 %v545, %v553
  %556 = vrot.lane.b32.xlu0 %v483, 117
  %v557 = vpop.permute.xlu0 %556
  %558 = vrot.lane.b32.xlu0 %v488, 117
  %v559 = vpop.permute.xlu0 %558
  %vm560 = vcmp.eq.s32.totalorder %v492, 7
  %vm561 = vcmp.eq.s32.totalorder %v493, 7
  %v562 = vsel %vm560, %v557, 0.0
  %v563 = vsel %vm561, %v559, 0.0
  %v564 = vadd.f32 %v554, %v562
  %v565 = vadd.f32 %v555, %v563
  %566 = vrot.lane.b32.xlu0 %v483, 112
  %v567 = vpop.permute.xlu0 %566
  %568 = vrot.lane.b32.xlu0 %v488, 112
  %v569 = vpop.permute.xlu0 %568
  %vm570 = vcmp.eq.s32.totalorder %v492, 8
  %vm571 = vcmp.eq.s32.totalorder %v493, 8
  %v572 = vsel %vm570, %v567, 0.0
  %v573 = vsel %vm571, %v569, 0.0
  %574 = vrot.lane.b32.xlu0 %v483, 111
  %v575 = vpop.permute.xlu0 %574
  %576 = vrot.lane.b32.xlu0 %v488, 111
  %v577 = vpop.permute.xlu0 %576
  %vm578 = vcmp.eq.s32.totalorder %v492, 9
  %vm579 = vcmp.eq.s32.totalorder %v493, 9
  %v580 = vsel %vm578, %v575, 0.0
  %v581 = vsel %vm579, %v577, 0.0
  %v582 = vadd.f32 %v572, %v580
  %v583 = vadd.f32 %v573, %v581
  %584 = vrot.lane.b32.xlu0 %v483, 110
  %v585 = vpop.permute.xlu0 %584
  %586 = vrot.lane.b32.xlu0 %v488, 110
  %v587 = vpop.permute.xlu0 %586
  %vm588 = vcmp.eq.s32.totalorder %v492, 10
  %vm589 = vcmp.eq.s32.totalorder %v493, 10
  %v590 = vsel %vm588, %v585, 0.0
  %v591 = vsel %vm589, %v587, 0.0
  %v592 = vadd.f32 %v582, %v590
  %v593 = vadd.f32 %v583, %v591
  %594 = vrot.lane.b32.xlu0 %v483, 109
  %v595 = vpop.permute.xlu0 %594
  %596 = vrot.lane.b32.xlu0 %v488, 109
  %v597 = vpop.permute.xlu0 %596
  %vm598 = vcmp.eq.s32.totalorder %v492, 11
  %vm599 = vcmp.eq.s32.totalorder %v493, 11
  %v600 = vsel %vm598, %v595, 0.0
  %v601 = vsel %vm599, %v597, 0.0
  %v602 = vadd.f32 %v592, %v600
  %v603 = vadd.f32 %v593, %v601
  %604 = vrot.lane.b32.xlu0 %v483, 104
  %v605 = vpop.permute.xlu0 %604
  %606 = vrot.lane.b32.xlu0 %v488, 104
  %v607 = vpop.permute.xlu0 %606
  %vm608 = vcmp.eq.s32.totalorder %v492, 12
  %vm609 = vcmp.eq.s32.totalorder %v493, 12
  %v610 = vsel %vm608, %v605, 0.0
  %v611 = vsel %vm609, %v607, 0.0
  %612 = vrot.lane.b32.xlu0 %v483, 103
  %v613 = vpop.permute.xlu0 %612
  %614 = vrot.lane.b32.xlu0 %v488, 103
  %v615 = vpop.permute.xlu0 %614
  %vm616 = vcmp.eq.s32.totalorder %v492, 13
  %vm617 = vcmp.eq.s32.totalorder %v493, 13
  %v618 = vsel %vm616, %v613, 0.0
  %v619 = vsel %vm617, %v615, 0.0
  %v620 = vadd.f32 %v610, %v618
  %v621 = vadd.f32 %v611, %v619
  %622 = vrot.lane.b32.xlu0 %v483, 102
  %v623 = vpop.permute.xlu0 %622
  %624 = vrot.lane.b32.xlu0 %v488, 102
  %v625 = vpop.permute.xlu0 %624
  %vm626 = vcmp.eq.s32.totalorder %v492, 14
  %vm627 = vcmp.eq.s32.totalorder %v493, 14
  %v628 = vsel %vm626, %v623, 0.0
  %v629 = vsel %vm627, %v625, 0.0
  %v630 = vadd.f32 %v620, %v628
  %v631 = vadd.f32 %v621, %v629
  %632 = vrot.lane.b32.xlu0 %v483, 101
  %v633 = vpop.permute.xlu0 %632
  %634 = vrot.lane.b32.xlu0 %v488, 101
  %v635 = vpop.permute.xlu0 %634
  %vm636 = vcmp.eq.s32.totalorder %v492, 15
  %vm637 = vcmp.eq.s32.totalorder %v493, 15
  %v638 = vsel %vm636, %v633, 0.0
  %v639 = vsel %vm637, %v635, 0.0
  %v640 = vadd.f32 %v630, %v638
  %v641 = vadd.f32 %v631, %v639
  %v642 = vadd.f32 %v526, %v564
  %v643 = vadd.f32 %v527, %v565
  %v644 = vadd.f32 %v602, %v640
  %v645 = vadd.f32 %v603, %v641
  %v646 = vadd.f32 %v642, %v644
  %v647 = vadd.f32 %v643, %v645
  %v648 = vadd.f32 %v646, %v647
  %v649 = vrot.slane %v648, 4
  %v650 = vadd.f32 %v648, %v649
  %v651 = vrot.slane %v650, 2
  %v652 = vadd.f32 %v650, %v651
  %v653 = vrot.slane %v652, 1
  %v654 = vadd.f32 %v652, %v653
  %655 = vst [vmem:[%s3] sm:$0x1] %v654
  // Predicated region
  $region14: #{single_disc_forward.1} parent=0 // pred_check
    _
  $region15: #{single_disc_forward.1} parent=0 // pred_check_branch
    %657 = sbr.rel (0) target = $region17
  $region16: #{single_disc_forward.1} parent=0 // pred_region
    _
  $region17: #{single_disc_forward.1} parent=0 // pred_fallthru
    _
  // Predicated region
  $region18: #{single_disc_forward.1} parent=0 // pred_check
    _
  $region19: #{single_disc_forward.1} parent=0 // pred_check_branch
    %659 = sbr.rel (0) target = $region21
  $region20: #{single_disc_forward.1} parent=0 // pred_region
    _
  $region21: #{single_disc_forward.1} parent=0 // pred_fallthru
    _

</llo_original>
